<compile_context>
chip_gen: v6e
topology: v6e:2x2x1
jax: 0.10.0
libtpu: 0.0.40
codegen_flags: <defaults>
</compile_context>

<pallas_src>
import functools

import jax
import jax.numpy as jnp
import numpy as np
from jax.experimental import pallas as pl
from jax.experimental.pallas import tpu as pltpu

SMOOTH_NR = 1e-5  # MONAI GeneralizedDiceLoss defaults
SMOOTH_DR = 1e-5


def _gdl_ce_stats_kernel(logits_ref, tgt_ref, stats_ref, *,
                         n_rows, ns_chunk, per_class_ce, has_ragged):
    """Accumulate per-(batch, class) Dice / CE statistics over spatial tiles.

    logits_ref : (1, C, sub_t, 128) logits tile (native dtype, cast to f32 here)
    tgt_ref    : (1, 1, sub_t, 128) int8 labels (-1 marks padded voxels)
    stats_ref  : (1, 1, 4, C, 128) f32 lane-dense accumulator, rows =
                 [intersection, pred_sum, ground_sum, ce_sum]
    """
    p_idx = pl.program_id(1)
    s_idx = pl.program_id(2)

    @pl.when(s_idx == 0)
    def _init():
        stats_ref[...] = jnp.zeros_like(stats_ref)

    x = logits_ref[0].astype(jnp.float32)          # (C, sub_t, 128)
    t = tgt_ref[0, 0].astype(jnp.int32)            # (sub_t, 128)

    if has_ragged:
        # Rows at/after n_rows belong to an out-of-bounds (garbage) part of the last
        # ragged block: force their label to the -1 sentinel and zero their pred.
        sub_t = x.shape[1]
        row_base = (p_idx * ns_chunk + s_idx) * sub_t
        row_ids = jax.lax.broadcasted_iota(jnp.int32, t.shape, 0) + row_base
        rvalid = row_ids < n_rows
        t = jnp.where(rvalid, t, -1)

    # Numerically stable softmax over the channel (leading, non-vreg) axis: every
    # reduction is an elementwise VPU op across C fully-packed vreg slabs.
    m = jnp.max(x, axis=0)                          # (sub_t, 128)
    ex = jnp.exp(x - m[None])                       # (C, sub_t, 128)
    se = jnp.sum(ex, axis=0)                        # (sub_t, 128)
    inv0 = pl.reciprocal(se, approx=True)           # EUP slot
    inv_se = inv0 * (2.0 - se * inv0)               # one Newton step -> ~f32 accuracy
    log_se = jnp.log(se)
    p = ex * inv_se[None]                           # softmax probabilities

    # One-hot target as a boolean mask (never matches the -1 padding sentinel).
    cls = jax.lax.broadcasted_iota(jnp.int32, x.shape, 0)
    mask = cls == t[None]                           # (C, sub_t, 128) bool

    if has_ragged:
        pred_src = jnp.where(rvalid[None], p, 0.0)  # drop garbage rows (NaN-safe)
    else:
        pred_src = p

    inter_p = jnp.sum(jnp.where(mask, p, 0.0), axis=1)       # (C, 128)
    pred_p = jnp.sum(pred_src, axis=1)                       # (C, 128)
    ground_p = jnp.sum(mask.astype(jnp.float32), axis=1)     # (C, 128)

    stats_ref[0, 0, 0] += inter_p
    stats_ref[0, 0, 1] += pred_p
    stats_ref[0, 0, 2] += ground_p

    if per_class_ce:
        # Class-weighted CE needs per-class sums of -log p_true.
        nll = (m + log_se)[None] - x                           # (C, sub_t, 128)
        ce_p = jnp.sum(jnp.where(mask, nll, 0.0), axis=1)      # (C, 128)
        stats_ref[0, 0, 3] += ce_p
    else:
        # Unweighted CE only needs the total: -log p_true = (m + log_se) - x_true.
        x_true = jnp.sum(jnp.where(mask, x, 0.0), axis=0)      # (sub_t, 128)
        ce_vox = jnp.where(t >= 0, (m + log_se) - x_true, 0.0)
        ce_lane = jnp.sum(ce_vox, axis=0)                      # (128,)
        stats_ref[0, 0, 3] += ce_lane[None, :]                 # replicated over class slots


def _pick_sub_t(R, C, itemsize, budget_bytes=20 << 20, max_sub_t=512):
    """Pick the sublane-tile size (rows of 128 voxels per grid step)."""
    # Per-row footprint: double-buffered logits + int8 targets pipeline buffers, plus
    # ~6 compiler-managed f32 (C, sub_t, 128) intermediates and a few (sub_t, 128) temps.
    per_row = 2 * 128 * (C * int(itemsize) + 1) + 6 * C * 128 * 4 + 8 * 128 * 4
    by_budget = max(32, (budget_bytes // per_row) // 32 * 32)   # 32 = int8 sublane packing
    sub_t = int(min(by_budget, max_sub_t))
    if R <= sub_t:
        return int(R)   # single spatial step; block == full row dim is always layout-legal
    return sub_t


def _compute_stats(logits4, tgt4, sub_t, per_class_ce):
    """Run the Pallas kernel, returning lane-dense stats of shape (B, P, 4, C, 128)."""
    B, C, R, _ = logits4.shape
    ns = -(-R // sub_t)                 # number of spatial blocks (possibly ragged)
    P = 2 if ns >= 2 else 1             # 2-way spatial split -> both v7x TCs busy at small B
    ns_chunk = -(-ns // P)
    has_ragged = (P * ns_chunk * sub_t) != R

    def sp_map(b, p, s):
        # Clamp so an over-allocated step on the last chunk re-reads the final block
        # (its rows are then fully masked by the in-kernel row-validity check).
        return (b, 0, jnp.minimum(p * ns_chunk + s, ns - 1), 0)

    kernel = functools.partial(_gdl_ce_stats_kernel, n_rows=R, ns_chunk=ns_chunk,
                               per_class_ce=per_class_ce, has_ragged=has_ragged)

    itemsize = jnp.dtype(logits4.dtype).itemsize
    n_vox = B * R * 128
    cost = pl.CostEstimate(
        flops=int(16 * C * n_vox),
        transcendentals=int((C + 2) * n_vox),
        bytes_accessed=int(n_vox * (C * itemsize + 1) + B * P * 4 * C * 128 * 4))

    return pl.pallas_call(
        kernel,
        out_shape=jax.ShapeDtypeStruct((B, P, 4, C, 128), jnp.float32),
        grid_spec=pltpu.PrefetchScalarGridSpec(
            num_scalar_prefetch=0,
            grid=(B, P, ns_chunk),
            in_specs=[
                pl.BlockSpec((1, C, sub_t, 128), sp_map),
                pl.BlockSpec((1, 1, sub_t, 128), sp_map),
            ],
            out_specs=pl.BlockSpec((1, 1, 4, C, 128), lambda b, p, s: (b, p, 0, 0, 0)),
        ),
        compiler_params=pltpu.CompilerParams(
            dimension_semantics=("parallel", "parallel", "arbitrary"),
            vmem_limit_bytes=32 << 20),
        cost_estimate=cost,
    )(logits4, tgt4)


@jax.jit
def generalized_dice_ce_loss(outputs, targets, weight=None):
    """JAX/Pallas equivalent of GeneralizedDiceCELoss.forward.

    outputs : (B, C, H, W, D) float logits (any float dtype; bf16 stays bf16 on HBM)
    targets : (B, H, W, D) integer class labels (C < 128 assumed)
    weight  : optional (C,) class weights for the CE term (nn.CrossEntropyLoss weight)
    """
    B, C = outputs.shape[0], outputs.shape[1]
    S = int(np.prod(outputs.shape[2:]))

    logits = outputs.reshape(B, C, S)                     # keep native dtype
    tgt = targets.reshape(B, 1, S).astype(jnp.int8)       # int8 labels: 4x less HBM

    rem = S % 128
    pad = (128 - rem) % 128
    if pad:
        # TODO(synk): only when S isn't 128-aligned; the <=127-voxel pad still copies the
        # logits once in HBM — unavoidable without abandoning the lane-dense layout.
        logits = jnp.pad(logits, ((0, 0), (0, 0), (0, pad)))
        tgt = jnp.pad(tgt, ((0, 0), (0, 0), (0, pad)), constant_values=-1)
    R = (S + pad) // 128
    logits4 = logits.reshape(B, C, R, 128)                # metadata-only when pad == 0
    tgt4 = tgt.reshape(B, 1, R, 128)

    sub_t = _pick_sub_t(R, C, jnp.dtype(logits.dtype).itemsize)
    per_class_ce = weight is not None

    stats = _compute_stats(logits4, tgt4, sub_t, per_class_ce)   # (B, P, 4, C, 128)
    stats = jnp.sum(stats, axis=(1, 4))                          # (B, 4, C)
    inter = stats[:, 0]          # (B, C)
    pred_o = stats[:, 1]         # (B, C)
    ground_o = stats[:, 2]       # (B, C)
    ce_row = stats[:, 3]         # (B, C)

    if pad:
        # Padded logits are exactly zero -> each padded voxel contributes exactly 1/C
        # to every class's pred sum; correct here instead of masking per voxel in-kernel.
        pred_o = pred_o - pad / C

    # --- Generalized Dice loss (include_background=True, w_type='square',
    #     to_onehot_y=True, softmax=True, batch=False, reduction='mean') ---
    denominator = ground_o + pred_o
    w = 1.0 / (ground_o * ground_o)
    infs = jnp.isinf(w)
    w = jnp.where(infs, 0.0, w)
    w = w + infs.astype(w.dtype) * jnp.max(w, axis=1, keepdims=True)
    numer = 2.0 * jnp.sum(inter * w, axis=1, keepdims=True) + SMOOTH_NR
    denom = jnp.sum(denominator * w, axis=1, keepdims=True) + SMOOTH_DR
    dice_loss = jnp.mean(1.0 - numer / denom)

    # --- Cross entropy (reduction='mean', optional class weights) ---
    if weight is None:
        ce_loss = jnp.sum(ce_row[:, 0]) / (B * S)
    else:
        w_c = jnp.asarray(weight, jnp.float32)[None, :]      # (1, C)
        ce_loss = jnp.sum(w_c * ce_row) / jnp.sum(w_c * ground_o)

    return (dice_loss + ce_loss) / 2.0


def _reference_loss(outputs, targets, weight=None):
    """Pure-JAX reference mirroring MONAI GeneralizedDiceLoss + nn.CrossEntropyLoss."""
    B, C = outputs.shape[0], outputs.shape[1]
    x = outputs.reshape(B, C, -1).astype(jnp.float32)
    y = targets.reshape(B, -1)
    p = jax.nn.softmax(x, axis=1)
    logp = jax.nn.log_softmax(x, axis=1)
    onehot = jax.nn.one_hot(y, C, axis=1, dtype=jnp.float32)  # (B, C, S)

    inter = jnp.sum(onehot * p, axis=2)
    pred_o = jnp.sum(p, axis=2)
    ground_o = jnp.sum(onehot, axis=2)
    denominator = ground_o + pred_o
    w = 1.0 / (ground_o * ground_o)
    infs = jnp.isinf(w)
    w = jnp.where(infs, 0.0, w)
    w = w + infs.astype(w.dtype) * jnp.max(w, axis=1, keepdims=True)
    numer = 2.0 * jnp.sum(inter * w, axis=1, keepdims=True) + SMOOTH_NR
    denom = jnp.sum(denominator * w, axis=1, keepdims=True) + SMOOTH_DR
    dice = jnp.mean(1.0 - numer / denom)

    nll = -jnp.sum(onehot * logp, axis=1)                     # (B, S)
    if weight is None:
        ce = jnp.mean(nll)
    else:
        w_c = jnp.asarray(weight, jnp.float32)
        wt = w_c[y]
        ce = jnp.sum(wt * nll) / jnp.sum(wt)
    return (dice + ce) / 2.0


if __name__ == "__main__":
    key = jax.random.PRNGKey(0)
    ks = jax.random.split(key, 6)

    # Case 1: 128-aligned spatial size (512 voxels) -> zero-copy reshape, single block.
    outputs = jax.random.normal(ks[0], (2, 4, 8, 8, 8), dtype=jnp.float32)
    targets = jax.random.randint(ks[1], (2, 8, 8, 8), 0, 4, dtype=jnp.int32)
    loss = jax.block_until_ready(generalized_dice_ce_loss(outputs, targets))
    ref = jax.block_until_ready(_reference_loss(outputs, targets))
    assert np.allclose(np.asarray(loss), np.asarray(ref), rtol=1e-4, atol=1e-5), (loss, ref)

    # Case 2: odd channel count + spatial size not a multiple of 128 (pad-correction path).
    outputs2 = jax.random.normal(ks[2], (2, 3, 5, 6, 7), dtype=jnp.float32)
    targets2 = jax.random.randint(ks[3], (2, 5, 6, 7), 0, 3, dtype=jnp.int32)
    loss2 = jax.block_until_ready(generalized_dice_ce_loss(outputs2, targets2))
    ref2 = jax.block_until_ready(_reference_loss(outputs2, targets2))
    assert np.allclose(np.asarray(loss2), np.asarray(ref2), rtol=1e-4, atol=1e-5), (loss2, ref2)

    # Case 3: bf16 logits, larger volume -> exercises the ragged multi-step grid,
    # the 2-way spatial parallel split (B=1) and in-row padding together.
    outputs3 = jax.random.normal(ks[4], (1, 4, 47, 47, 48), dtype=jnp.bfloat16)
    targets3 = jax.random.randint(ks[5], (1, 47, 47, 48), 0, 4, dtype=jnp.int32)
    loss3 = jax.block_until_ready(generalized_dice_ce_loss(outputs3, targets3))
    ref3 = jax.block_until_ready(_reference_loss(outputs3, targets3))
    assert np.allclose(np.asarray(loss3), np.asarray(ref3), rtol=1e-3, atol=1e-4), (loss3, ref3)

    # Case 4: class-weighted CE path (per-class CE accumulation in-kernel).
    wvec = jnp.array([1.0, 2.0, 0.5, 1.5], jnp.float32)
    loss4 = jax.block_until_ready(generalized_dice_ce_loss(outputs, targets, wvec))
    ref4 = jax.block_until_ready(_reference_loss(outputs, targets, wvec))
    assert np.allclose(np.asarray(loss4), np.asarray(ref4), rtol=1e-4, atol=1e-5), (loss4, ref4)

    print("KERNEL_OK")
</pallas_src>

<mosaic_0001>
module attributes {stable_mosaic.version = 11 : i64} {
  func.func @_gdl_ce_stats_kernel(%arg0: i32, %arg1: i32, %arg2: i32, %arg3: memref<1x4x4x128xf32, #tpu.memory_space<vmem>>, %arg4: memref<1x1x4x128xi8, #tpu.memory_space<vmem>>, %arg5: memref<1x1x4x4x128xf32, #tpu.memory_space<vmem>>) attributes {dimension_semantics = [#tpu.dimension_semantics<parallel>, #tpu.dimension_semantics<parallel>, #tpu.dimension_semantics<arbitrary>], iteration_bounds = array<i64: 2, 1, 1>, scalar_prefetch = 0 : i64, scratch_operands = 0 : i64, tpu.core_type = #tpu.core_type<tc>, window_params = [{transform_indices = @transform_0, window_bounds = array<i64: 1, 4, 4, 128>}, {transform_indices = @transform_1, window_bounds = array<i64: 1, 1, 4, 128>}, {transform_indices = @transform_2, window_bounds = array<i64: 1, 1, 4, 4, 128>}]} {
    %c0_i32 = arith.constant 0 : i32
    %0 = arith.cmpi eq, %arg2, %c0_i32 : i32
    %1 = arith.extui %0 : i1 to i32
    %c0_i32_0 = arith.constant 0 : i32
    %2 = arith.cmpi ne, %1, %c0_i32_0 : i32
    scf.if %2 {
      %cst_56 = arith.constant 0.000000e+00 : f32
      %70 = vector.broadcast %cst_56 : f32 to vector<1x1x4x4x128xf32>
      %c0_57 = arith.constant 0 : index
      %c0_58 = arith.constant 0 : index
      %c0_59 = arith.constant 0 : index
      %c0_60 = arith.constant 0 : index
      %c0_61 = arith.constant 0 : index
      %71 = vector.load %arg5[%c0_57, %c0_58, %c0_59, %c0_60, %c0_61] : memref<1x1x4x4x128xf32, #tpu.memory_space<vmem>>, vector<1x1x4x4x128xf32>
      tpu.vector_store %arg5[%c0_57, %c0_58, %c0_59, %c0_60, %c0_61], %70 {strides = array<i32>} : memref<1x1x4x4x128xf32, #tpu.memory_space<vmem>>, vector<1x1x4x4x128xf32>,
    } else {
    }
    %c0 = arith.constant 0 : index
    %c0_1 = arith.constant 0 : index
    %c0_2 = arith.constant 0 : index
    %c0_3 = arith.constant 0 : index
    %3 = vector.load %arg3[%c0, %c0_1, %c0_2, %c0_3] : memref<1x4x4x128xf32, #tpu.memory_space<vmem>>, vector<1x4x4x128xf32>
    %4 = vector.shape_cast %3 : vector<1x4x4x128xf32> to vector<4x4x128xf32>
    %c0_4 = arith.constant 0 : index
    %c0_5 = arith.constant 0 : index
    %c0_6 = arith.constant 0 : index
    %c0_7 = arith.constant 0 : index
    %5 = vector.load %arg4[%c0_4, %c0_5, %c0_6, %c0_7] : memref<1x1x4x128xi8, #tpu.memory_space<vmem>>, vector<1x1x4x128xi8>
    %6 = vector.shape_cast %5 : vector<1x1x4x128xi8> to vector<4x128xi8>
    %7 = arith.extsi %6 : vector<4x128xi8> to vector<4x128xi32>
    %cst = arith.constant dense<0xFF800000> : vector<4x128xf32>
    %8 = vector.multi_reduction <maximumf>, %4, %cst [0] : vector<4x4x128xf32> to vector<4x128xf32>
    %9 = vector.shape_cast %8 : vector<4x128xf32> to vector<1x4x128xf32>
    %10 = vector.broadcast %9 : vector<1x4x128xf32> to vector<4x4x128xf32>
    %11 = arith.subf %4, %10 : vector<4x4x128xf32>
    %12 = math.exp %11 : vector<4x4x128xf32>
    %cst_8 = arith.constant dense<0.000000e+00> : vector<4x128xf32>
    %13 = vector.multi_reduction <add>, %12, %cst_8 [0] : vector<4x4x128xf32> to vector<4x128xf32>
    %14 = tpu.reciprocal %13 {approx = true} : vector<4x128xf32> -> vector<4x128xf32>
    %15 = arith.mulf %13, %14 : vector<4x128xf32>
    %cst_9 = arith.constant 2.000000e+00 : f32
    %16 = vector.broadcast %cst_9 : f32 to vector<4x128xf32>
    %17 = arith.subf %16, %15 : vector<4x128xf32>
    %18 = arith.mulf %14, %17 : vector<4x128xf32>
    %19 = math.log %13 : vector<4x128xf32>
    %20 = vector.shape_cast %18 : vector<4x128xf32> to vector<1x4x128xf32>
    %21 = vector.broadcast %20 : vector<1x4x128xf32> to vector<4x4x128xf32>
    %22 = arith.mulf %12, %21 : vector<4x4x128xf32>
    %23 = tpu.iota {dimensions = array<i32: 0>} : vector<4x4x128xi32>
    %24 = vector.shape_cast %7 : vector<4x128xi32> to vector<1x4x128xi32>
    %25 = vector.broadcast %24 : vector<1x4x128xi32> to vector<4x4x128xi32>
    %26 = arith.cmpi eq, %23, %25 : vector<4x4x128xi32>
    %cst_10 = arith.constant 0.000000e+00 : f32
    %27 = vector.broadcast %cst_10 : f32 to vector<4x4x128xf32>
    %28 = arith.select %26, %22, %27 : vector<4x4x128xi1>, vector<4x4x128xf32>
    %cst_11 = arith.constant dense<0.000000e+00> : vector<4x128xf32>
    %29 = vector.multi_reduction <add>, %28, %cst_11 [1] : vector<4x4x128xf32> to vector<4x128xf32>
    %cst_12 = arith.constant dense<0.000000e+00> : vector<4x128xf32>
    %30 = vector.multi_reduction <add>, %22, %cst_12 [1] : vector<4x4x128xf32> to vector<4x128xf32>
    %31 = arith.extui %26 : vector<4x4x128xi1> to vector<4x4x128xi32>
    %32 = arith.sitofp %31 : vector<4x4x128xi32> to vector<4x4x128xf32>
    %cst_13 = arith.constant dense<0.000000e+00> : vector<4x128xf32>
    %33 = vector.multi_reduction <add>, %32, %cst_13 [1] : vector<4x4x128xf32> to vector<4x128xf32>
    %c0_14 = arith.constant 0 : index
    %c0_15 = arith.constant 0 : index
    %c0_16 = arith.constant 0 : index
    %c0_17 = arith.constant 0 : index
    %c0_18 = arith.constant 0 : index
    %34 = vector.load %arg5[%c0_14, %c0_15, %c0_16, %c0_17, %c0_18] : memref<1x1x4x4x128xf32, #tpu.memory_space<vmem>>, vector<1x1x1x4x128xf32>
    %35 = vector.shape_cast %34 : vector<1x1x1x4x128xf32> to vector<4x128xf32>
    %36 = arith.addf %35, %29 : vector<4x128xf32>
    %c0_19 = arith.constant 0 : index
    %c0_20 = arith.constant 0 : index
    %c0_21 = arith.constant 0 : index
    %c0_22 = arith.constant 0 : index
    %c0_23 = arith.constant 0 : index
    %37 = vector.load %arg5[%c0_19, %c0_20, %c0_21, %c0_22, %c0_23] : memref<1x1x4x4x128xf32, #tpu.memory_space<vmem>>, vector<1x1x1x4x128xf32>
    %38 = vector.shape_cast %37 : vector<1x1x1x4x128xf32> to vector<4x128xf32>
    %39 = vector.shape_cast %36 : vector<4x128xf32> to vector<1x1x1x4x128xf32>
    tpu.vector_store %arg5[%c0_19, %c0_20, %c0_21, %c0_22, %c0_23], %39 {strides = array<i32>} : memref<1x1x4x4x128xf32, #tpu.memory_space<vmem>>, vector<1x1x1x4x128xf32>,
    %c0_24 = arith.constant 0 : index
    %c0_25 = arith.constant 0 : index
    %c1 = arith.constant 1 : index
    %c0_26 = arith.constant 0 : index
    %c0_27 = arith.constant 0 : index
    %40 = vector.load %arg5[%c0_24, %c0_25, %c1, %c0_26, %c0_27] : memref<1x1x4x4x128xf32, #tpu.memory_space<vmem>>, vector<1x1x1x4x128xf32>
    %41 = vector.shape_cast %40 : vector<1x1x1x4x128xf32> to vector<4x128xf32>
    %42 = arith.addf %41, %30 : vector<4x128xf32>
    %c0_28 = arith.constant 0 : index
    %c0_29 = arith.constant 0 : index
    %c1_30 = arith.constant 1 : index
    %c0_31 = arith.constant 0 : index
    %c0_32 = arith.constant 0 : index
    %43 = vector.load %arg5[%c0_28, %c0_29, %c1_30, %c0_31, %c0_32] : memref<1x1x4x4x128xf32, #tpu.memory_space<vmem>>, vector<1x1x1x4x128xf32>
    %44 = vector.shape_cast %43 : vector<1x1x1x4x128xf32> to vector<4x128xf32>
    %45 = vector.shape_cast %42 : vector<4x128xf32> to vector<1x1x1x4x128xf32>
    tpu.vector_store %arg5[%c0_28, %c0_29, %c1_30, %c0_31, %c0_32], %45 {strides = array<i32>} : memref<1x1x4x4x128xf32, #tpu.memory_space<vmem>>, vector<1x1x1x4x128xf32>,
    %c0_33 = arith.constant 0 : index
    %c0_34 = arith.constant 0 : index
    %c2 = arith.constant 2 : index
    %c0_35 = arith.constant 0 : index
    %c0_36 = arith.constant 0 : index
    %46 = vector.load %arg5[%c0_33, %c0_34, %c2, %c0_35, %c0_36] : memref<1x1x4x4x128xf32, #tpu.memory_space<vmem>>, vector<1x1x1x4x128xf32>
    %47 = vector.shape_cast %46 : vector<1x1x1x4x128xf32> to vector<4x128xf32>
    %48 = arith.addf %47, %33 : vector<4x128xf32>
    %c0_37 = arith.constant 0 : index
    %c0_38 = arith.constant 0 : index
    %c2_39 = arith.constant 2 : index
    %c0_40 = arith.constant 0 : index
    %c0_41 = arith.constant 0 : index
    %49 = vector.load %arg5[%c0_37, %c0_38, %c2_39, %c0_40, %c0_41] : memref<1x1x4x4x128xf32, #tpu.memory_space<vmem>>, vector<1x1x1x4x128xf32>
    %50 = vector.shape_cast %49 : vector<1x1x1x4x128xf32> to vector<4x128xf32>
    %51 = vector.shape_cast %48 : vector<4x128xf32> to vector<1x1x1x4x128xf32>
    tpu.vector_store %arg5[%c0_37, %c0_38, %c2_39, %c0_40, %c0_41], %51 {strides = array<i32>} : memref<1x1x4x4x128xf32, #tpu.memory_space<vmem>>, vector<1x1x1x4x128xf32>,
    %cst_42 = arith.constant 0.000000e+00 : f32
    %52 = vector.broadcast %cst_42 : f32 to vector<4x4x128xf32>
    %53 = arith.select %26, %4, %52 : vector<4x4x128xi1>, vector<4x4x128xf32>
    %cst_43 = arith.constant dense<0.000000e+00> : vector<4x128xf32>
    %54 = vector.multi_reduction <add>, %53, %cst_43 [0] : vector<4x4x128xf32> to vector<4x128xf32>
    %c0_i32_44 = arith.constant 0 : i32
    %55 = vector.broadcast %c0_i32_44 : i32 to vector<4x128xi32>
    %56 = arith.cmpi sge, %7, %55 : vector<4x128xi32>
    %57 = arith.addf %8, %19 : vector<4x128xf32>
    %58 = arith.subf %57, %54 : vector<4x128xf32>
    %cst_45 = arith.constant 0.000000e+00 : f32
    %59 = vector.broadcast %cst_45 : f32 to vector<4x128xf32>
    %60 = arith.select %56, %58, %59 : vector<4x128xi1>, vector<4x128xf32>
    %cst_46 = arith.constant dense<0.000000e+00> : vector<128xf32>
    %61 = vector.multi_reduction <add>, %60, %cst_46 [0] : vector<4x128xf32> to vector<128xf32>
    %c0_47 = arith.constant 0 : index
    %c0_48 = arith.constant 0 : index
    %c3 = arith.constant 3 : index
    %c0_49 = arith.constant 0 : index
    %c0_50 = arith.constant 0 : index
    %62 = vector.load %arg5[%c0_47, %c0_48, %c3, %c0_49, %c0_50] : memref<1x1x4x4x128xf32, #tpu.memory_space<vmem>>, vector<1x1x1x4x128xf32>
    %63 = vector.shape_cast %62 : vector<1x1x1x4x128xf32> to vector<4x128xf32>
    %64 = vector.shape_cast %61 : vector<128xf32> to vector<1x128xf32>
    %65 = vector.broadcast %64 : vector<1x128xf32> to vector<4x128xf32>
    %66 = arith.addf %63, %65 : vector<4x128xf32>
    %c0_51 = arith.constant 0 : index
    %c0_52 = arith.constant 0 : index
    %c3_53 = arith.constant 3 : index
    %c0_54 = arith.constant 0 : index
    %c0_55 = arith.constant 0 : index
    %67 = vector.load %arg5[%c0_51, %c0_52, %c3_53, %c0_54, %c0_55] : memref<1x1x4x4x128xf32, #tpu.memory_space<vmem>>, vector<1x1x1x4x128xf32>
    %68 = vector.shape_cast %67 : vector<1x1x1x4x128xf32> to vector<4x128xf32>
    %69 = vector.shape_cast %66 : vector<4x128xf32> to vector<1x1x1x4x128xf32>
    tpu.vector_store %arg5[%c0_51, %c0_52, %c3_53, %c0_54, %c0_55], %69 {strides = array<i32>} : memref<1x1x4x4x128xf32, #tpu.memory_space<vmem>>, vector<1x1x1x4x128xf32>,
    return
  }
  func.func @transform_0(%arg0: i32, %arg1: i32, %arg2: i32) -> (i32, i32, i32, i32) {
    %c1_i32 = arith.constant 1 : i32
    %0 = arith.muli %arg1, %c1_i32 : i32
    %1 = arith.addi %0, %arg2 : i32
    %c0_i32 = arith.constant 0 : i32
    %2 = arith.minsi %1, %c0_i32 : i32
    %c0_i32_0 = arith.constant 0 : i32
    %c0_i32_1 = arith.constant 0 : i32
    %c0_i32_2 = arith.constant 0 : i32
    return %arg0, %c0_i32_0, %2, %c0_i32_1 : i32, i32, i32, i32
  }
  func.func @transform_1(%arg0: i32, %arg1: i32, %arg2: i32) -> (i32, i32, i32, i32) {
    %c1_i32 = arith.constant 1 : i32
    %0 = arith.muli %arg1, %c1_i32 : i32
    %1 = arith.addi %0, %arg2 : i32
    %c0_i32 = arith.constant 0 : i32
    %2 = arith.minsi %1, %c0_i32 : i32
    %c0_i32_0 = arith.constant 0 : i32
    %c0_i32_1 = arith.constant 0 : i32
    %c0_i32_2 = arith.constant 0 : i32
    return %arg0, %c0_i32_0, %2, %c0_i32_1 : i32, i32, i32, i32
  }
  func.func @transform_2(%arg0: i32, %arg1: i32, %arg2: i32) -> (i32, i32, i32, i32, i32) {
    %c0_i32 = arith.constant 0 : i32
    %c0_i32_0 = arith.constant 0 : i32
    %c0_i32_1 = arith.constant 0 : i32
    %c0_i32_2 = arith.constant 0 : i32
    return %arg0, %arg1, %c0_i32, %c0_i32_0, %c0_i32_1 : i32, i32, i32, i32, i32
  }
}

</mosaic_0001>

<llo_original>
// kernel: generalized_dice_ce_loss.1
$region0: #{generalized_dice_ce_loss.1}
  #allocation0 [shape = 'u32[]', space=smem, size = 0x4, offset = 0x4, fixed_abs, tag = 'smem constant byte address 0x4 - core index']
  #allocation1 [shape = 'u32[144,128]{1,0:T(1,128)}', space=vmem, size = 0x12000, scoped, tag = 'internal scratch']
  %s0 = inlined_call_operand.vmem [shape: f32[2,4,4,128], index: 0, kind: input, shape index: {}]
  %s1 = inlined_call_operand.vmem [shape: s8[2,1,4,128], index: 1, kind: input, shape index: {}]
  %s2 = inlined_call_operand.vmem [shape: f32[2,1,4,4,128], index: 2, kind: output, shape index: {}]
  %s3 = sld [smem:[#allocation0]]
  $region45: #{generalized_dice_ce_loss.1} parent=0
    _
  %s5 = ssub.s32 1, %s3
  %s6 = scalar_select 0, %s5, %s3
  loop: start=0, step=1, limit=4
  $region2: #{generalized_dice_ce_loss.1} parent=0 // loop_pre_header
    _
  $region3: #{generalized_dice_ce_loss.1} parent=0 // loop_header
    %s8 = sphi 0, %s12
    %p9 = scmp.ge.s32.totalorder %s8, 4
    %s15 = sphi 0, %s34
    %s16 = sphi 0, %s30
    %s17 = sphi 0, %s26
    %s18 = sphi 0, %s15
    %s19 = sphi 0, %s16
    %s20 = sphi 0, %s17
    %s21 = sphi 0, %s18
    %s22 = sphi 0, %s19
    %s23 = sphi 0, %s20
    %s45 = sphi 0, %s47
    %s48 = sphi 0, %s45
    %s49 = sphi 0, %s48
    %s65 = sphi 0, %s49
    %s79 = sphi 0, %s81
    %s82 = sphi 0, %s79
    %s83 = sphi 0, %s82
    %s99 = sphi 0, %s83
    %s107 = sphi 0, %s109
    %s110 = sphi 0, %s107
    %s111 = sphi 0, %s110
    %s127 = sphi 0, %s111
  $region4: #{generalized_dice_ce_loss.1} parent=0 // loop_header_branch
    %11 = sbr.rel (%p9) target = $region8
  $region5: #{generalized_dice_ce_loss.1} parent=0 // loop_body
    %s13 = ssub.s32 %s8, 1
    %s14 = ssub.s32 %s8, 2
    %s24 = sadd.s32 1, %s17
    %p25 = scmp.ge.s32.totalorder %s24, 1
    %s26 = scalar_select %p25, 0, %s24
    %s27 = sadd.s32 1, %s16
    %s28 = scalar_select %p25, %s27, %s16
    %p29 = scmp.ge.s32.totalorder %s28, 1
    %s30 = scalar_select %p29, 0, %s28
    %s31 = sadd.s32 1, %s15
    %s32 = scalar_select %p29, %s31, %s15
    %p33 = scmp.ge.s32.totalorder %s32, 2
    %s34 = scalar_select %p33, 0, %s32
    %s35 = sadd.s32 %s16, %s17
    %p36 = scmp.lt.s32.totalorder %s35, 0
    %s37 = scalar_select %p36, %s35, 0
    %s38 = sadd.s32 %s30, %s26
    %p39 = scmp.lt.s32.totalorder %s38, 0
    %s40 = scalar_select %p39, %s38, 0
    %s41 = ssub.s32 %s15, %s34
    %s42 = ssub.s32 %s37, %s40
    %s43 = sor.u32 %s41, %s42
    %p44 = scmp.eq.s32.totalorder %s43, 0
    %s46 = sadd.s32 %s45, 1
    %s47 = scalar_select %p44, %s45, %s46
    %p50 = pneg %p44
    %p51 = scmp.eq.s32.totalorder %s8, 1
    %p52 = por %p50, %p51
    %p53 = scmp.ne.s32.totalorder %s45, %s48
    %p54 = scmp.eq.s32.totalorder %s8, 0
    %p55 = por %p53, %p54
    %p56 = scmp.ne.s32.totalorder %s45, %s48
    %p57 = scmp.eq.s32.totalorder %s13, 1
    %p58 = por %p56, %p57
    %p59 = scmp.ne.s32.totalorder %s48, %s49
    %p60 = scmp.eq.s32.totalorder %s13, 0
    %p61 = por %p59, %p60
    %p62 = scmp.ne.s32.totalorder %s48, %s49
    %p63 = scmp.eq.s32.totalorder %s14, 1
    %p64 = por %p62, %p63
    %p66 = scmp.ne.s32.totalorder %s49, %s65
    %p67 = scmp.eq.s32.totalorder %s14, 0
    %p68 = por %p66, %p67
    %s69 = sadd.s32 %s16, %s17
    %p70 = scmp.lt.s32.totalorder %s69, 0
    %s71 = scalar_select %p70, %s69, 0
    %s72 = sadd.s32 %s30, %s26
    %p73 = scmp.lt.s32.totalorder %s72, 0
    %s74 = scalar_select %p73, %s72, 0
    %s75 = ssub.s32 %s15, %s34
    %s76 = ssub.s32 %s71, %s74
    %s77 = sor.u32 %s75, %s76
    %p78 = scmp.eq.s32.totalorder %s77, 0
    %s80 = sadd.s32 %s79, 1
    %s81 = scalar_select %p78, %s79, %s80
    %p84 = pneg %p78
    %p85 = scmp.eq.s32.totalorder %s8, 1
    %p86 = por %p84, %p85
    %p87 = scmp.ne.s32.totalorder %s79, %s82
    %p88 = scmp.eq.s32.totalorder %s8, 0
    %p89 = por %p87, %p88
    %p90 = scmp.ne.s32.totalorder %s79, %s82
    %p91 = scmp.eq.s32.totalorder %s13, 1
    %p92 = por %p90, %p91
    %p93 = scmp.ne.s32.totalorder %s82, %s83
    %p94 = scmp.eq.s32.totalorder %s13, 0
    %p95 = por %p93, %p94
    %p96 = scmp.ne.s32.totalorder %s82, %s83
    %p97 = scmp.eq.s32.totalorder %s14, 1
    %p98 = por %p96, %p97
    %p100 = scmp.ne.s32.totalorder %s83, %s99
    %p101 = scmp.eq.s32.totalorder %s14, 0
    %p102 = por %p100, %p101
    %s103 = ssub.s32 %s15, %s34
    %s104 = ssub.s32 %s16, %s30
    %s105 = sor.u32 %s103, %s104
    %p106 = scmp.eq.s32.totalorder %s105, 0
    %s108 = sadd.s32 %s107, 1
    %s109 = scalar_select %p106, %s107, %s108
    %p112 = pneg %p106
    %p113 = scmp.eq.s32.totalorder %s8, 1
    %p114 = por %p112, %p113
    %p115 = scmp.ne.s32.totalorder %s107, %s110
    %p116 = scmp.eq.s32.totalorder %s8, 0
    %p117 = por %p115, %p116
    %p118 = scmp.ne.s32.totalorder %s107, %s110
    %p119 = scmp.eq.s32.totalorder %s13, 1
    %p120 = por %p118, %p119
    %p121 = scmp.ne.s32.totalorder %s110, %s111
    %p122 = scmp.eq.s32.totalorder %s13, 0
    %p123 = por %p121, %p122
    %p124 = scmp.ne.s32.totalorder %s110, %s111
    %p125 = scmp.eq.s32.totalorder %s14, 1
    %p126 = por %p124, %p125
    %p128 = scmp.ne.s32.totalorder %s111, %s127
    %p129 = scmp.eq.s32.totalorder %s14, 0
    %p130 = por %p128, %p129
    %p131 = scmp.le.s32.totalorder 1, %s8
    %p132 = scmp.lt.s32.totalorder %s8, 3
    %p133 = pnand %p131, %p132
    %p134 = pneg %p133
    // Predicated region
    $region9: #{generalized_dice_ce_loss.1} parent=5 // pred_check
      _
    $region10: #{generalized_dice_ce_loss.1} parent=5 // pred_check_branch
      %136 = sbr.rel (%p133) target = $region12
    $region11: #{generalized_dice_ce_loss.1} parent=5 // pred_region
      %s137 = ssub.s32 %s8, 1
    $region12: #{generalized_dice_ce_loss.1} parent=5 // pred_fallthru
      _
    %p138 = scmp.lt.s32.totalorder %s8, 2
    // Predicated region
    $region13: #{generalized_dice_ce_loss.1} parent=5 // pred_check
      %p139 = pneg %p138
    $region14: #{generalized_dice_ce_loss.1} parent=5 // pred_check_branch
      %141 = sbr.rel (%p139) target = $region16
    $region15: #{generalized_dice_ce_loss.1} parent=5 // pred_region
      // Predicated region
      $region17: #{generalized_dice_ce_loss.1} parent=15 // pred_check
        %p142 = pneg %p55
      $region18: #{generalized_dice_ce_loss.1} parent=15 // pred_check_branch
        %144 = sbr.rel (%p142) target = $region20
      $region19: #{generalized_dice_ce_loss.1} parent=15 // pred_region
        %s145 = sadd.s32 %s16, %s17
        %p146 = scmp.lt.s32.totalorder %s145, 0
        %s147 = scalar_select %p146, %s145, 0
        %p148 = scmp.lt.s32.totalorder %s15, 1
        %s149 = scalar_select %p148, %s15, 1
        %p150 = scmp.lt.s32.totalorder %s147, 0
        %s151 = scalar_select %p150, %s147, 0
        %s152 = smul.addr %s149, 4
        %s153 = sadd.s32 %s151, %s152
        %s154 = smul.addr %s153, 4
        %s155 = scalar_lea.vmem %s0, %s154
        %s156 = sadd.s32 %s16, %s17
        %p157 = scmp.lt.s32.totalorder %s156, 0
        %s158 = scalar_select %p157, %s156, 0
      $region20: #{generalized_dice_ce_loss.1} parent=15 // pred_fallthru
        _
      // Predicated region
      $region21: #{generalized_dice_ce_loss.1} parent=15 // pred_check
        %p159 = pneg %p89
      $region22: #{generalized_dice_ce_loss.1} parent=15 // pred_check_branch
        %161 = sbr.rel (%p159) target = $region24
      $region23: #{generalized_dice_ce_loss.1} parent=15 // pred_region
        %s162 = sadd.s32 %s16, %s17
        %p163 = scmp.lt.s32.totalorder %s162, 0
        %s164 = scalar_select %p163, %s162, 0
        %p165 = scmp.lt.s32.totalorder %s15, 1
        %s166 = scalar_select %p165, %s15, 1
        %p167 = scmp.lt.s32.totalorder %s164, 0
        %s168 = scalar_select %p167, %s164, 0
        %s169 = sadd.s32 %s168, %s166
        %s170 = scalar_lea.vmem %s1, %s169
        %s171 = sadd.s32 %s16, %s17
        %p172 = scmp.lt.s32.totalorder %s171, 0
        %s173 = scalar_select %p172, %s171, 0
      $region24: #{generalized_dice_ce_loss.1} parent=15 // pred_fallthru
        _
    $region16: #{generalized_dice_ce_loss.1} parent=5 // pred_fallthru
      _
    %p174 = scmp.le.s32.totalorder 1, %s8
    %p175 = scmp.lt.s32.totalorder %s8, 3
    %p176 = pnand %p174, %p175
    %p177 = pneg %p176
    // Predicated region
    $region25: #{generalized_dice_ce_loss.1} parent=5 // pred_check
      _
    $region26: #{generalized_dice_ce_loss.1} parent=5 // pred_check_branch
      %179 = sbr.rel (%p176) target = $region28
    $region27: #{generalized_dice_ce_loss.1} parent=5 // pred_region
      %s180 = ssub.s32 %s8, 1
      %s181 = sadd.s32 %s19, %s20
      %p182 = scmp.lt.s32.totalorder %s181, 0
      %s183 = scalar_select %p182, %s181, 0
      %p184 = scmp.lt.s32.totalorder %s18, 1
      %s185 = scalar_select %p184, %s18, 1
      %p186 = scmp.lt.s32.totalorder %s183, 0
      %s187 = scalar_select %p186, %s183, 0
      %s188 = smul.addr %s185, 4
      %s189 = sadd.s32 %s187, %s188
      %s190 = smul.addr %s189, 4
      %s191 = scalar_lea.vmem %s0, %s190
      %p192 = pneg %p61
      %p193 = pneg %p58
      %s194 = sadd.s32 %s19, %s20
      %p195 = scmp.lt.s32.totalorder %s194, 0
      %s196 = scalar_select %p195, %s194, 0
      %p197 = scmp.lt.s32.totalorder %s18, 1
      %s198 = scalar_select %p197, %s18, 1
      %p199 = scmp.lt.s32.totalorder %s196, 0
      %s200 = scalar_select %p199, %s196, 0
      %s201 = sadd.s32 %s200, %s198
      %s202 = scalar_lea.vmem %s1, %s201
      %p203 = pneg %p95
      %p204 = pneg %p92
      %p205 = pneg %p123
      %p206 = pneg %p120
      %p207 = scmp.lt.s32.totalorder %s18, 1
      %s208 = scalar_select %p207, %s18, 1
      %p209 = scmp.lt.s32.totalorder %s19, 0
      %s210 = scalar_select %p209, %s19, 0
      %s211 = smul.addr %s210, 4
      %s212 = smul.addr %s208, 4
      %s213 = sadd.s32 %s211, %s212
      %s214 = smul.addr %s213, 4
      %s215 = scalar_lea.vmem %s2, %s214
      %s216 = sadd.s32 %s19, %s20
      %p217 = scmp.lt.s32.totalorder %s216, 0
      %s218 = scalar_select %p217, %s216, 0
      %p219 = scmp.lt.s32.totalorder %s18, 1
      %s220 = scalar_select %p219, %s18, 1
      %p221 = scmp.lt.s32.totalorder %s218, 0
      %s222 = scalar_select %p221, %s218, 0
      %s223 = smul.addr %s220, 4
      %s224 = sadd.s32 %s222, %s223
      %s225 = smul.addr %s224, 4
      %s226 = scalar_lea.vmem %s0, %s225
      %s227 = sadd.s32 %s19, %s20
      %p228 = scmp.lt.s32.totalorder %s227, 0
      %s229 = scalar_select %p228, %s227, 0
      %s230 = sadd.s32 %s19, %s20
      %p231 = scmp.lt.s32.totalorder %s230, 0
      %s232 = scalar_select %p231, %s230, 0
      %p233 = scmp.lt.s32.totalorder %s18, 1
      %s234 = scalar_select %p233, %s18, 1
      %p235 = scmp.lt.s32.totalorder %s232, 0
      %s236 = scalar_select %p235, %s232, 0
      %s237 = sadd.s32 %s236, %s234
      %s238 = scalar_lea.vmem %s1, %s237
      %s239 = sadd.s32 %s19, %s20
      %p240 = scmp.lt.s32.totalorder %s239, 0
      %s241 = scalar_select %p240, %s239, 0
      %p242 = scmp.lt.s32.totalorder %s18, 1
      %s243 = scalar_select %p242, %s18, 1
      %p244 = scmp.lt.s32.totalorder %s19, 0
      %s245 = scalar_select %p244, %s19, 0
      %s246 = smul.addr %s245, 4
      %s247 = smul.addr %s243, 4
      %s248 = sadd.s32 %s246, %s247
      %s249 = smul.addr %s248, 4
      %s250 = scalar_lea.vmem %s2, %s249
      %p251 = scmp.eq.s32.totalorder %s20, 0
      // Predicated region
      $region29: #{generalized_dice_ce_loss.1} parent=27 // pred_check
        %p252 = pneg %p251
      $region30: #{generalized_dice_ce_loss.1} parent=27 // pred_check_branch
        %254 = sbr.rel (%p252) target = $region32
      $region31: #{generalized_dice_ce_loss.1} parent=27 // pred_region
        %255 = vst [vmem:[%s250] sm:$0xf] 0.0
        %256 = vst [vmem:[%s250 + $0x4] sm:$0xf] 0.0
        %257 = vst [vmem:[%s250 + $0x8] sm:$0xf] 0.0
        %258 = vst [vmem:[%s250 + $0xc] sm:$0xf] 0.0
      $region32: #{generalized_dice_ce_loss.1} parent=27 // pred_fallthru
        _
      %v259 = vld [vmem:[%s226] sm:$0xf]
      %v260 = vld [vmem:[%s226 + $0x4] sm:$0xf]
      %v261 = vld [vmem:[%s226 + $0x8] sm:$0xf]
      %v262 = vld [vmem:[%s226 + $0xc] sm:$0xf]
      %v263 = vld [vmem:[%s238] sm:$0x1]
      %v264 = vunpack.c.0.s8 %v263
      %vm265 = vcmask 1043456
      %v266 = vsel %vm265, %v259, -inf
      %v267 = vsel %vm265, %v260, -inf
      %v268 = vsel %vm265, %v261, -inf
      %v269 = vsel %vm265, %v262, -inf
      %v270 = vmax.f32 %v266, %v267
      %v271 = vmax.f32 %v268, %v269
      %v272 = vmax.f32 %v270, %v271
      %v273 = vsub.f32 %v259, %v272
      %v274 = vsub.f32 %v260, %v272
      %v275 = vsub.f32 %v261, %v272
      %v276 = vsub.f32 %v262, %v272
      %v277 = vmul.f32 %v273, 1.442695
      %v278 = vpow.pop %v277
      %v279 = vmul.f32 %v274, 1.442695
      %v280 = vpow.pop %v279
      %v281 = vmul.f32 %v275, 1.442695
      %v282 = vpow.pop %v281
      %v283 = vmul.f32 %v276, 1.442695
      %v284 = vpow.pop %v283
      %v285 = vsel %vm265, %v278, 0.0
      %v286 = vsel %vm265, %v280, 0.0
      %v287 = vadd.f32 %v285, %v286
      %v288 = vsel %vm265, %v282, 0.0
      %v289 = vadd.f32 %v287, %v288
      %v290 = vsel %vm265, %v284, 0.0
      %v291 = vadd.f32 %v289, %v290
      %v292 = vrcp.pop %v291
      %v293 = vmul.f32 %v291, %v292
      %v294 = vsub.f32 2.0, %v293
      %v295 = vmul.f32 %v292, %v294
      %v296 = vlog2.pop %v291
      %v297 = vmul.f32 %v296, 0.6931472
      %v298 = vmul.f32 %v278, %v295
      %v299 = vmul.f32 %v280, %v295
      %v300 = vmul.f32 %v282, %v295
      %v301 = vmul.f32 %v284, %v295
      %vm302 = vcmp.eq.s32.totalorder %v264, 0
      %vm303 = vcmp.eq.s32.totalorder %v264, 1
      %vm304 = vcmp.eq.s32.totalorder %v264, 2
      %vm305 = vcmp.eq.s32.totalorder %v264, 3
      %v306 = vsel %vm302, %v298, 0.0
      %v307 = vsel %vm303, %v299, 0.0
      %v308 = vsel %vm304, %v300, 0.0
      %v309 = vsel %vm305, %v301, 0.0
      %v310 = vsel %vm265, %v306, 0.0
      %v311 = vrot.slane %v310, 4
      %v312 = vadd.f32 %v310, %v311
      %v313 = vrot.slane %v312, 2
      %v314 = vadd.f32 %v312, %v313
      %v315 = vrot.slane %v314, 1
      %v316 = vadd.f32 %v314, %v315
      %v317 = vsel %vm265, %v307, 0.0
      %v318 = vrot.slane %v317, 4
      %v319 = vadd.f32 %v317, %v318
      %v320 = vrot.slane %v319, 2
      %v321 = vadd.f32 %v319, %v320
      %v322 = vrot.slane %v321, 1
      %v323 = vadd.f32 %v321, %v322
      %v324 = vsel %vm265, %v308, 0.0
      %v325 = vrot.slane %v324, 4
      %v326 = vadd.f32 %v324, %v325
      %v327 = vrot.slane %v326, 2
      %v328 = vadd.f32 %v326, %v327
      %v329 = vrot.slane %v328, 1
      %v330 = vadd.f32 %v328, %v329
      %v331 = vsel %vm265, %v309, 0.0
      %v332 = vrot.slane %v331, 4
      %v333 = vadd.f32 %v331, %v332
      %v334 = vrot.slane %v333, 2
      %v335 = vadd.f32 %v333, %v334
      %v336 = vrot.slane %v335, 1
      %v337 = vadd.f32 %v335, %v336
      %v338 = vsel %vm265, %v298, 0.0
      %v339 = vrot.slane %v338, 4
      %v340 = vadd.f32 %v338, %v339
      %v341 = vrot.slane %v340, 2
      %v342 = vadd.f32 %v340, %v341
      %v343 = vrot.slane %v342, 1
      %v344 = vadd.f32 %v342, %v343
      %v345 = vsel %vm265, %v299, 0.0
      %v346 = vrot.slane %v345, 4
      %v347 = vadd.f32 %v345, %v346
      %v348 = vrot.slane %v347, 2
      %v349 = vadd.f32 %v347, %v348
      %v350 = vrot.slane %v349, 1
      %v351 = vadd.f32 %v349, %v350
      %v352 = vsel %vm265, %v300, 0.0
      %v353 = vrot.slane %v352, 4
      %v354 = vadd.f32 %v352, %v353
      %v355 = vrot.slane %v354, 2
      %v356 = vadd.f32 %v354, %v355
      %v357 = vrot.slane %v356, 1
      %v358 = vadd.f32 %v356, %v357
      %v359 = vsel %vm265, %v301, 0.0
      %v360 = vrot.slane %v359, 4
      %v361 = vadd.f32 %v359, %v360
      %v362 = vrot.slane %v361, 2
      %v363 = vadd.f32 %v361, %v362
      %v364 = vrot.slane %v363, 1
      %v365 = vadd.f32 %v363, %v364
      %v366 = vsel %vm302, 1, 0
      %v367 = vsel %vm303, 1, 0
      %v368 = vsel %vm304, 1, 0
      %v369 = vsel %vm305, 1, 0
      %v370 = vcvt.s32.f32 %v366
      %v371 = vcvt.s32.f32 %v367
      %v372 = vcvt.s32.f32 %v368
      %v373 = vcvt.s32.f32 %v369
      %v374 = vsel %vm265, %v370, 0.0
      %v375 = vrot.slane %v374, 4
      %v376 = vadd.f32 %v374, %v375
      %v377 = vrot.slane %v376, 2
      %v378 = vadd.f32 %v376, %v377
      %v379 = vrot.slane %v378, 1
      %v380 = vadd.f32 %v378, %v379
      %v381 = vsel %vm265, %v371, 0.0
      %v382 = vrot.slane %v381, 4
      %v383 = vadd.f32 %v381, %v382
      %v384 = vrot.slane %v383, 2
      %v385 = vadd.f32 %v383, %v384
      %v386 = vrot.slane %v385, 1
      %v387 = vadd.f32 %v385, %v386
      %v388 = vsel %vm265, %v372, 0.0
      %v389 = vrot.slane %v388, 4
      %v390 = vadd.f32 %v388, %v389
      %v391 = vrot.slane %v390, 2
      %v392 = vadd.f32 %v390, %v391
      %v393 = vrot.slane %v392, 1
      %v394 = vadd.f32 %v392, %v393
      %v395 = vsel %vm265, %v373, 0.0
      %v396 = vrot.slane %v395, 4
      %v397 = vadd.f32 %v395, %v396
      %v398 = vrot.slane %v397, 2
      %v399 = vadd.f32 %v397, %v398
      %v400 = vrot.slane %v399, 1
      %v401 = vadd.f32 %v399, %v400
      %v402 = vld [vmem:[%s250] sm:$0xf]
      %vm407 = vcmask 1041409
      %v408 = vsel %vm407, %v323, %v316
      %vm409 = vcmask 1042434
      %v410 = vsel %vm409, %v330, %v408
      %vm411 = vcmask 1043459
      %v412 = vsel %vm411, %v337, %v410
      %v414 = vadd.f32 %v402, %v412
      %415 = vst [vmem:[%s250] sm:$0xf] %v414
      %s416 = scalar_lea.vmem %s250, 4
      %v417 = vld [vmem:[%s416] sm:$0xf]
      %v422 = vsel %vm407, %v351, %v344
      %v423 = vsel %vm409, %v358, %v422
      %v424 = vsel %vm411, %v365, %v423
      %v426 = vadd.f32 %v417, %v424
      %427 = vst [vmem:[%s416] sm:$0xf] %v426
      %s428 = scalar_lea.vmem %s250, 8
      %v429 = vld [vmem:[%s428] sm:$0xf]
      %v434 = vsel %vm407, %v387, %v380
      %v435 = vsel %vm409, %v394, %v434
      %v436 = vsel %vm411, %v401, %v435
      %v438 = vadd.f32 %v429, %v436
      %439 = vst [vmem:[%s428] sm:$0xf] %v438
      %v440 = vsel %vm302, %v259, 0.0
      %v441 = vsel %vm303, %v260, 0.0
      %v442 = vsel %vm304, %v261, 0.0
      %v443 = vsel %vm305, %v262, 0.0
      %v444 = vsel %vm265, %v440, 0.0
      %v445 = vsel %vm265, %v441, 0.0
      %v446 = vadd.f32 %v444, %v445
      %v447 = vsel %vm265, %v442, 0.0
      %v448 = vadd.f32 %v446, %v447
      %v449 = vsel %vm265, %v443, 0.0
      %v450 = vadd.f32 %v448, %v449
      %vm451 = vcmp.ge.s32.totalorder %v264, 0
      %v452 = vadd.f32 %v272, %v297
      %v453 = vsub.f32 %v452, %v450
      %v454 = vsel %vm451, %v453, 0.0
      %v455 = vsel %vm265, %v454, 0.0
      %v456 = vrot.slane %v455, 4
      %v457 = vadd.f32 %v455, %v456
      %v458 = vrot.slane %v457, 2
      %v459 = vadd.f32 %v457, %v458
      %v460 = vrot.slane %v459, 1
      %v461 = vadd.f32 %v459, %v460
      %s462 = scalar_lea.vmem %s250, 12
      %v463 = vld [vmem:[%s462] sm:$0xf]
      %v464 = vadd.f32 %v463, %v461
      %465 = vst [vmem:[%s462] sm:$0xf] %v464
      %p466 = scmp.lt.s32.totalorder %s18, 1
      %s467 = scalar_select %p466, %s18, 1
      %p468 = scmp.lt.s32.totalorder %s19, 0
      %s469 = scalar_select %p468, %s19, 0
      %s470 = smul.addr %s469, 4
      %s471 = smul.addr %s467, 4
      %s472 = sadd.s32 %s470, %s471
      %s473 = smul.addr %s472, 4
      %s474 = scalar_lea.vmem %s2, %s473
      // Predicated region
      $region33: #{generalized_dice_ce_loss.1} parent=27 // pred_check
        %p475 = pneg %p120
      $region34: #{generalized_dice_ce_loss.1} parent=27 // pred_check_branch
        %477 = sbr.rel (%p475) target = $region36
      $region35: #{generalized_dice_ce_loss.1} parent=27 // pred_region
        _
      $region36: #{generalized_dice_ce_loss.1} parent=27 // pred_fallthru
        _
    $region28: #{generalized_dice_ce_loss.1} parent=5 // pred_fallthru
      _
    %p478 = scmp.le.s32.totalorder 2, %s8
    // Predicated region
    $region37: #{generalized_dice_ce_loss.1} parent=5 // pred_check
      %p479 = pneg %p478
    $region38: #{generalized_dice_ce_loss.1} parent=5 // pred_check_branch
      %481 = sbr.rel (%p479) target = $region40
    $region39: #{generalized_dice_ce_loss.1} parent=5 // pred_region
      %s482 = ssub.s32 %s8, 2
      // Predicated region
      $region41: #{generalized_dice_ce_loss.1} parent=39 // pred_check
        %p483 = pneg %p126
      $region42: #{generalized_dice_ce_loss.1} parent=39 // pred_check_branch
        %485 = sbr.rel (%p483) target = $region44
      $region43: #{generalized_dice_ce_loss.1} parent=39 // pred_region
        %p486 = scmp.lt.s32.totalorder %s21, 1
        %s487 = scalar_select %p486, %s21, 1
        %p488 = scmp.lt.s32.totalorder %s22, 0
        %s489 = scalar_select %p488, %s22, 0
        %s490 = smul.addr %s489, 4
        %s491 = smul.addr %s487, 4
        %s492 = sadd.s32 %s490, %s491
        %s493 = smul.addr %s492, 4
        %s494 = scalar_lea.vmem %s2, %s493
      $region44: #{generalized_dice_ce_loss.1} parent=39 // pred_fallthru
        _
    $region40: #{generalized_dice_ce_loss.1} parent=5 // pred_fallthru
      _
  $region6: #{generalized_dice_ce_loss.1} parent=0 // loop_footer
    %s12 = sadd.s32 1, %s8
  $region7: #{generalized_dice_ce_loss.1} parent=0 // loop_footer_branch
    %7 = sbr.rel target = $region3
  $region8: #{generalized_dice_ce_loss.1} parent=0 // loop_exit
    _

</llo_original>
